<compile_context>
chip_gen: v6e
topology: v6e:2x2x1
jax: 0.10.0
libtpu: 0.0.40
codegen_flags: <defaults>
</compile_context>

<pallas_src>
import functools

import jax
import jax.numpy as jnp
from jax.experimental import pallas as pl
from jax.experimental.pallas import tpu as pltpu


def _round_up(x, m):
    return ((x + m - 1) // m) * m


def _supports_bf16_eup():
    """bf16 transcendental path exists on v6e/v7x; v5e (and older) do not."""
    try:
        kind = jax.devices()[0].device_kind.lower()
    except Exception:
        return False
    return not any(v in kind for v in ("v2", "v3", "v4", "v5"))


def decoder_kernel(z_ref, w1_ref, b1_ref, w2_ref, b2_ref, o_ref, *, bf16_eup):
    # Hidden layer: (TB, latent)bf16 @ (latent, 128)bf16 -> f32 acc, +b1, ReLU
    h = jnp.dot(z_ref[...], w1_ref[...], preferred_element_type=jnp.float32)
    h = jnp.maximum(h + b1_ref[...], 0.0)              # b1 (1,128) broadcasts

    # Output layer: (TB, 128)bf16 @ (128, 784)bf16 -> f32 acc, +b2
    y = jnp.dot(h.astype(jnp.bfloat16), w2_ref[...],
                preferred_element_type=jnp.float32)
    t = y + b2_ref[...]                                # b2 (1,784) broadcasts

    # Sigmoid(t) = 1 / (1 + exp(-t)); exp in bf16 where the EUP supports it,
    # denominator reciprocal via the approx EUP op (error << 2e-2 tolerance).
    if bf16_eup:
        e = jnp.exp((-t).astype(jnp.bfloat16)).astype(jnp.float32)
    else:
        e = jnp.exp(-t)
    o_ref[...] = pl.reciprocal(1.0 + e, approx=True).astype(o_ref.dtype)


def prepare_params(w1, b1, w2, b2):
    """One-time weight prep (hoisted out of the per-call path): bf16 matmul
    operands, f32 biases.  Weights are stored (in, out) = torch weight.T."""
    return (w1.astype(jnp.bfloat16), b1.astype(jnp.float32),
            w2.astype(jnp.bfloat16), b2.astype(jnp.float32))


def decoder_forward(z, w1_bf, b1, w2_bf, b2, height=28, width=28,
                    block_b=512, out_dtype=jnp.float32):
    """z: (B, latent_dim) float32.  w1_bf/w2_bf from prepare_params().
    Returns (B, 1, height, width) in out_dtype (default float32)."""
    B, latent = z.shape
    hw = height * width

    # Batch tiling: multiples of 16 (bf16 sublane packing).  Cap the tile at
    # ~half the padded batch so large batches always give >=2 grid blocks
    # (keeps both v7x TensorCores busy and the DMA pipeline full).
    b_round = _round_up(B, 16)
    half = _round_up((b_round + 1) // 2, 16)
    tb = max(16, min(block_b, half))
    b_pad = _round_up(b_round, tb)

    z_bf = z.astype(jnp.bfloat16)
    if b_pad != B:
        z_bf = jnp.pad(z_bf, ((0, b_pad - B), (0, 0)))

    num_blocks = b_pad // tb
    semantics = ("parallel",) if num_blocks > 1 else ("arbitrary",)

    out = pl.pallas_call(
        functools.partial(decoder_kernel, bf16_eup=_supports_bf16_eup()),
        out_shape=jax.ShapeDtypeStruct((b_pad, hw), out_dtype),
        grid=(num_blocks,),
        in_specs=[
            pl.BlockSpec((tb, latent), lambda i: (i, 0)),   # z tile (pipelined)
            pl.BlockSpec((latent, 128), lambda i: (0, 0)),  # w1 (VMEM-resident)
            pl.BlockSpec((1, 128), lambda i: (0, 0)),       # b1 (resident)
            pl.BlockSpec((128, hw), lambda i: (0, 0)),      # w2 (resident; hw == full dim)
            pl.BlockSpec((1, hw), lambda i: (0, 0)),        # b2 (resident)
        ],
        out_specs=pl.BlockSpec((tb, hw), lambda i: (i, 0)),
        compiler_params=pltpu.CompilerParams(
            dimension_semantics=semantics,
        ),
    )(z_bf, w1_bf, b1, w2_bf, b2)

    # Only slice when the batch actually needed padding; otherwise the reshape
    # is a free metadata op (no extra HBM traffic).
    if b_pad != B:
        out = out[:B]
    return out.reshape((-1, 1, height, width))


def init_params(key, latent_dim, height, width):
    """Deterministic PyTorch-style init: U(-1/sqrt(fan_in), 1/sqrt(fan_in))."""
    hw = height * width
    k1, k2, k3, k4 = jax.random.split(key, 4)
    bound1 = 1.0 / jnp.sqrt(latent_dim)
    bound2 = 1.0 / jnp.sqrt(128.0)
    # Stored as (in, out) = transpose of torch's (out, in) weight.
    w1 = jax.random.uniform(k1, (latent_dim, 128), jnp.float32, -bound1, bound1)
    b1 = jax.random.uniform(k2, (1, 128), jnp.float32, -bound1, bound1)
    w2 = jax.random.uniform(k3, (128, hw), jnp.float32, -bound2, bound2)
    b2 = jax.random.uniform(k4, (1, hw), jnp.float32, -bound2, bound2)
    return w1, b1, w2, b2


def reference_forward(z, w1, b1, w2, b2, height=28, width=28):
    h = jnp.maximum(z @ w1 + b1, 0.0)
    y = jax.nn.sigmoid(h @ w2 + b2)
    return y.reshape((-1, 1, height, width))


if __name__ == "__main__":
    HEIGHT, WIDTH, LATENT_DIM, BATCH = 28, 28, 32, 8

    key = jax.random.PRNGKey(0)
    kz, kp = jax.random.split(key)
    z = jax.random.normal(kz, (BATCH, LATENT_DIM), jnp.float32)
    w1, b1, w2, b2 = init_params(kp, LATENT_DIM, HEIGHT, WIDTH)
    w1_bf, b1_p, w2_bf, b2_p = prepare_params(w1, b1, w2, b2)

    out = decoder_forward(z, w1_bf, b1_p, w2_bf, b2_p, HEIGHT, WIDTH)
    out = jax.block_until_ready(out)

    # f32 reference; tolerance relaxed because the kernel uses bf16 matmul
    # operands, (optionally) bf16 exp, and approx reciprocal with f32
    # accumulation (sigmoid output error ~1e-3, bound 2e-2).
    ref = reference_forward(z, w1, b1, w2, b2, HEIGHT, WIDTH)
    assert out.shape == (BATCH, 1, HEIGHT, WIDTH), out.shape
    assert jnp.allclose(out.astype(jnp.float32), ref, atol=2e-2, rtol=0.0), \
        "mismatch vs reference"

    print("KERNEL_OK")
</pallas_src>

<mosaic_0001>
module attributes {stable_mosaic.version = 11 : i64} {
  func.func @decoder_kernel(%arg0: i32, %arg1: memref<16x32xbf16, #tpu.memory_space<vmem>>, %arg2: memref<32x128xbf16, #tpu.memory_space<vmem>>, %arg3: memref<1x128xf32, #tpu.memory_space<vmem>>, %arg4: memref<128x784xbf16, #tpu.memory_space<vmem>>, %arg5: memref<1x784xf32, #tpu.memory_space<vmem>>, %arg6: memref<16x784xf32, #tpu.memory_space<vmem>>) attributes {dimension_semantics = [#tpu.dimension_semantics<arbitrary>], iteration_bounds = array<i64: 1>, scalar_prefetch = 0 : i64, scratch_operands = 0 : i64, tpu.core_type = #tpu.core_type<tc>, window_params = [{transform_indices = @transform_0, window_bounds = array<i64: 16, 32>}, {pipeline_mode = #tpu.pipeline_mode<synchronous>, transform_indices = @transform_1, window_bounds = array<i64: 32, 128>}, {pipeline_mode = #tpu.pipeline_mode<synchronous>, transform_indices = @transform_2, window_bounds = array<i64: 1, 128>}, {pipeline_mode = #tpu.pipeline_mode<synchronous>, transform_indices = @transform_3, window_bounds = array<i64: 128, 784>}, {pipeline_mode = #tpu.pipeline_mode<synchronous>, transform_indices = @transform_4, window_bounds = array<i64: 1, 784>}, {transform_indices = @transform_5, window_bounds = array<i64: 16, 784>}]} {
    %c0 = arith.constant 0 : index
    %c0_0 = arith.constant 0 : index
    %0 = vector.load %arg1[%c0, %c0_0] : memref<16x32xbf16, #tpu.memory_space<vmem>>, vector<16x32xbf16>
    %c0_1 = arith.constant 0 : index
    %c0_2 = arith.constant 0 : index
    %1 = vector.load %arg2[%c0_1, %c0_2] : memref<32x128xbf16, #tpu.memory_space<vmem>>, vector<32x128xbf16>
    %cst = arith.constant dense<0.000000e+00> : vector<16x128xf32>
    %2 = tpu.matmul %0, %1, %cst {dimension_numbers = #tpu.dot_dimension_numbers<[1], [0], [0], [1], [0, 0, 1, 1], [], []>} : vector<16x32xbf16>, vector<32x128xbf16>, vector<16x128xf32> -> vector<16x128xf32>
    %c0_3 = arith.constant 0 : index
    %c0_4 = arith.constant 0 : index
    %3 = vector.load %arg3[%c0_3, %c0_4] : memref<1x128xf32, #tpu.memory_space<vmem>>, vector<1x128xf32>
    %4 = vector.broadcast %3 : vector<1x128xf32> to vector<16x128xf32>
    %5 = arith.addf %2, %4 : vector<16x128xf32>
    %cst_5 = arith.constant 0.000000e+00 : f32
    %6 = vector.broadcast %cst_5 : f32 to vector<16x128xf32>
    %7 = arith.maximumf %5, %6 : vector<16x128xf32>
    %8 = arith.truncf %7 : vector<16x128xf32> to vector<16x128xbf16>
    %c0_6 = arith.constant 0 : index
    %c0_7 = arith.constant 0 : index
    %9 = vector.load %arg4[%c0_6, %c0_7] : memref<128x784xbf16, #tpu.memory_space<vmem>>, vector<128x784xbf16>
    %cst_8 = arith.constant dense<0.000000e+00> : vector<16x784xf32>
    %10 = tpu.matmul %8, %9, %cst_8 {dimension_numbers = #tpu.dot_dimension_numbers<[1], [0], [0], [1], [0, 0, 1, 1], [], []>} : vector<16x128xbf16>, vector<128x784xbf16>, vector<16x784xf32> -> vector<16x784xf32>
    %c0_9 = arith.constant 0 : index
    %c0_10 = arith.constant 0 : index
    %11 = vector.load %arg5[%c0_9, %c0_10] : memref<1x784xf32, #tpu.memory_space<vmem>>, vector<1x784xf32>
    %12 = vector.broadcast %11 : vector<1x784xf32> to vector<16x784xf32>
    %13 = arith.addf %10, %12 : vector<16x784xf32>
    %cst_11 = arith.constant 0.000000e+00 : f32
    %14 = vector.broadcast %cst_11 : f32 to vector<16x784xf32>
    %15 = arith.subf %14, %13 : vector<16x784xf32>
    %16 = arith.truncf %15 : vector<16x784xf32> to vector<16x784xbf16>
    %17 = math.exp %16 : vector<16x784xbf16>
    %18 = arith.extf %17 : vector<16x784xbf16> to vector<16x784xf32>
    %cst_12 = arith.constant 1.000000e+00 : f32
    %19 = vector.broadcast %cst_12 : f32 to vector<16x784xf32>
    %20 = arith.addf %19, %18 : vector<16x784xf32>
    %21 = tpu.reciprocal %20 {approx = true} : vector<16x784xf32> -> vector<16x784xf32>
    %c0_13 = arith.constant 0 : index
    %c0_14 = arith.constant 0 : index
    %22 = vector.load %arg6[%c0_13, %c0_14] : memref<16x784xf32, #tpu.memory_space<vmem>>, vector<16x784xf32>
    tpu.vector_store %arg6[%c0_13, %c0_14], %21 {strides = array<i32>} : memref<16x784xf32, #tpu.memory_space<vmem>>, vector<16x784xf32>,
    return
  }
  func.func @transform_0(%arg0: i32) -> (i32, i32) {
    %c0_i32 = arith.constant 0 : i32
    %c0_i32_0 = arith.constant 0 : i32
    return %arg0, %c0_i32 : i32, i32
  }
  func.func @transform_1(%arg0: i32) -> (i32, i32) {
    %c0_i32 = arith.constant 0 : i32
    %c0_i32_0 = arith.constant 0 : i32
    %c0_i32_1 = arith.constant 0 : i32
    return %c0_i32, %c0_i32_0 : i32, i32
  }
  func.func @transform_2(%arg0: i32) -> (i32, i32) {
    %c0_i32 = arith.constant 0 : i32
    %c0_i32_0 = arith.constant 0 : i32
    %c0_i32_1 = arith.constant 0 : i32
    return %c0_i32, %c0_i32_0 : i32, i32
  }
  func.func @transform_3(%arg0: i32) -> (i32, i32) {
    %c0_i32 = arith.constant 0 : i32
    %c0_i32_0 = arith.constant 0 : i32
    %c0_i32_1 = arith.constant 0 : i32
    return %c0_i32, %c0_i32_0 : i32, i32
  }
  func.func @transform_4(%arg0: i32) -> (i32, i32) {
    %c0_i32 = arith.constant 0 : i32
    %c0_i32_0 = arith.constant 0 : i32
    %c0_i32_1 = arith.constant 0 : i32
    return %c0_i32, %c0_i32_0 : i32, i32
  }
  func.func @transform_5(%arg0: i32) -> (i32, i32) {
    %c0_i32 = arith.constant 0 : i32
    %c0_i32_0 = arith.constant 0 : i32
    return %arg0, %c0_i32 : i32, i32
  }
}

</mosaic_0001>

<llo_original>
// kernel: tpu_custom_call.1
$region0: #{tpu_custom_call.1}
  #allocation0 [shape = 'u32[]', space=smem, size = 0x4, offset = 0x4, fixed_abs, tag = 'smem constant byte address 0x4 - core index']
  #allocation1 [shape = 'u32[144,128]{1,0:T(1,128)}', space=vmem, size = 0x12000, scoped, tag = 'internal scratch']
  %s0 = inlined_call_operand.vmem [shape: bf16[16,32], index: 0, kind: input, shape index: {}]
  %s1 = inlined_call_operand.vmem [shape: bf16[32,128], index: 1, kind: input, shape index: {}]
  %s2 = inlined_call_operand.vmem [shape: f32[1,128], index: 2, kind: input, shape index: {}]
  %s3 = inlined_call_operand.vmem [shape: bf16[128,784], index: 3, kind: input, shape index: {}]
  %s4 = inlined_call_operand.vmem [shape: f32[1,784], index: 4, kind: input, shape index: {}]
  %s5 = inlined_call_operand.hbm [shape: f32[16,784], index: 5, kind: output, shape index: {}]
  %s6 = sld [smem:[#allocation0]]
  $region30: #{tpu_custom_call.1} parent=0
    _
  %s8 = ssub.s32 1, %s6
  %s9 = scalar_select 0, %s8, %s6
  $region1: #{tpu_custom_call.1} parent=0
    #allocation2 [shape = 'u8[57344]{0}', space=vmem, size = 0xe000, scoped, tag = 'output window, operand 0, single buffered']
    #allocation3 [shape = 's32[1]{0}', space=sflag, size = 0x4, scoped, tag = 'scoped memory for tpu_custom_call.1']
    %10 = vsyncpa [#allocation3], 0
    // Predicated region
    $region2: #{tpu_custom_call.1} parent=1 // pred_check
      _
    $region3: #{tpu_custom_call.1} parent=1 // pred_check_branch
      %12 = sbr.rel (0) target = $region5
    $region4: #{tpu_custom_call.1} parent=1 // pred_region
      _
    $region5: #{tpu_custom_call.1} parent=1 // pred_fallthru
      _
    // Predicated region
    $region6: #{tpu_custom_call.1} parent=1 // pred_check
      _
    $region7: #{tpu_custom_call.1} parent=1 // pred_check_branch
      %14 = sbr.rel (0) target = $region9
    $region8: #{tpu_custom_call.1} parent=1 // pred_region
      _
    $region9: #{tpu_custom_call.1} parent=1 // pred_fallthru
      _
    // Predicated region
    $region10: #{tpu_custom_call.1} parent=1 // pred_check
      _
    $region11: #{tpu_custom_call.1} parent=1 // pred_check_branch
      %16 = sbr.rel (0) target = $region13
    $region12: #{tpu_custom_call.1} parent=1 // pred_region
      _
    $region13: #{tpu_custom_call.1} parent=1 // pred_fallthru
      _
    // Predicated region
    $region14: #{tpu_custom_call.1} parent=1 // pred_check
      _
    $region15: #{tpu_custom_call.1} parent=1 // pred_check_branch
      %18 = sbr.rel (0) target = $region17
    $region16: #{tpu_custom_call.1} parent=1 // pred_region
      _
    $region17: #{tpu_custom_call.1} parent=1 // pred_fallthru
      _
    // Predicated region
    $region18: #{tpu_custom_call.1} parent=1 // pred_check
      _
    $region19: #{tpu_custom_call.1} parent=1 // pred_check_branch
      %20 = sbr.rel (0) target = $region21
    $region20: #{tpu_custom_call.1} parent=1 // pred_region
      _
    $region21: #{tpu_custom_call.1} parent=1 // pred_fallthru
      _
    %v22 = vld [vmem:[%s0] sm:$0xf]
    %v23 = vld [vmem:[%s0 + $0x4] sm:$0xf]
    %v24 = vld [vmem:[%s1] sm:$0xf]
    %v25 = vld [vmem:[%s1 + $0x4] sm:$0xf]
    %v26 = vld [vmem:[%s1 + $0x8] sm:$0xf]
    %v27 = vld [vmem:[%s1 + $0xc] sm:$0xf]
    %v28 = vld [vmem:[%s2] sm:$0x1]
    %v30 = vlaneseq
    %v31 = vshrl.u32 %v30, 7
    %v32 = vsub.s32 0, %v31
    %v33 = vrot.slane %v28, %v32
    %v37 = vunpack.c.l.b16 %v22
    %v38 = vunpack.c.l.b16 %v23
    %v39 = vpack.c.b16 %v38, %v37
    %v44 = vunpack.c.l.b16 %v24
    %v45 = vunpack.c.l.b16 %v25
    %v46 = vunpack.c.l.b16 %v26
    %v47 = vunpack.c.l.b16 %v27
    %v48 = vpack.c.b16 %v45, %v44
    %v49 = vpack.c.b16 %v47, %v46
    %vm52 = vcmask 261120
    %v54 = vsel %vm52, %v39, 0
    %56 = vmatprep.subr.bf16.mxu0 0
    %57 = vmatpush1.bf16.msra.mxu0 0
    %58 = vmatprep.subr.bf16.mxu0 0
    %59 = vmatpush1.bf16.msra.mxu0 0
    %60 = vmatprep.subr.bf16.mxu0 0
    %61 = vmatpush1.bf16.msra.mxu0 0
    %62 = vmatprep.subr.bf16.mxu0 0
    %63 = vmatpush1.bf16.msra.mxu0 0
    %64 = vmatprep.subr.bf16.mxu0 0
    %65 = vmatpush1.bf16.msra.mxu0 0
    %66 = vmatprep.subr.bf16.mxu0 0
    %67 = vmatpush1.bf16.msra.mxu0 0
    %68 = vmatprep.subr.bf16.mxu0 0
    %69 = vmatpush1.bf16.msra.mxu0 %v49
    %70 = vmatprep.subr.bf16.mxu0 0
    %71 = vmatpush1.bf16.msra.mxu0 %v48
    %72 = vmatprep.subr.bf16.mxu0 0
    %73 = vmatpush2.bf16.msra.mxu0 0
    %74 = vmatprep.subr.bf16.mxu0 0
    %75 = vmatpush2.bf16.msra.mxu0 0
    %76 = vmatprep.subr.bf16.mxu0 0
    %77 = vmatpush2.bf16.msra.mxu0 0
    %78 = vmatprep.subr.bf16.mxu0 0
    %79 = vmatpush2.bf16.msra.mxu0 0
    %80 = vmatprep.subr.bf16.mxu0 0
    %81 = vmatpush2.bf16.msra.mxu0 0
    %82 = vmatprep.subr.bf16.mxu0 0
    %83 = vmatpush2.bf16.msra.mxu0 0
    %84 = vmatprep.subr.bf16.mxu0 0
    %85 = vmatpush2.bf16.msra.mxu0 0
    %86 = vmatprep.subr.bf16.mxu0 0
    %87 = vmatpush2.bf16.msra.mxu0 0
    %88 = vmatprep.mubr.bf16.mxu0 0
    %89 = vmatmul.mubr.bf16.gmra.mxu0 %v54
    %v90 = vpop.f32.mrf.mxu0
    %v91 = vadd.f32 %v33, %v90
    %v92 = vpop.f32.mrf.mxu0
    %v93 = vpop.f32.mrf.mxu0
    %v94 = vadd.f32 %v33, %v93
    %v95 = vpop.f32.mrf.mxu0
    %96 = vdwg.mxu0
    %v97 = vmax.f32 %v91, 0.0
    %v98 = vmax.f32 %v94, 0.0
    %v99 = vpack.c.bf16 %v98, %v97
    %v100 = vld [vmem:[%s3] sm:$0xff]
    %v101 = vld [vmem:[%s3 + $0x8] sm:$0xff]
    %v102 = vld [vmem:[%s3 + $0x10] sm:$0xff]
    %v103 = vld [vmem:[%s3 + $0x18] sm:$0xf]
    %v104 = vld [vmem:[%s3 + $0x1c] sm:$0xff]
    %v105 = vld [vmem:[%s3 + $0x24] sm:$0xff]
    %v106 = vld [vmem:[%s3 + $0x2c] sm:$0xff]
    %v107 = vld [vmem:[%s3 + $0x34] sm:$0xf]
    %v108 = vld [vmem:[%s3 + $0x38] sm:$0xff]
    %v109 = vld [vmem:[%s3 + $0x40] sm:$0xff]
    %v110 = vld [vmem:[%s3 + $0x48] sm:$0xff]
    %v111 = vld [vmem:[%s3 + $0x50] sm:$0xf]
    %v112 = vld [vmem:[%s3 + $0x54] sm:$0xff]
    %v113 = vld [vmem:[%s3 + $0x5c] sm:$0xff]
    %v114 = vld [vmem:[%s3 + $0x64] sm:$0xff]
    %v115 = vld [vmem:[%s3 + $0x6c] sm:$0xf]
    %v116 = vld [vmem:[%s3 + $0x70] sm:$0xff]
    %v117 = vld [vmem:[%s3 + $0x78] sm:$0xff]
    %v118 = vld [vmem:[%s3 + $0x80] sm:$0xff]
    %v119 = vld [vmem:[%s3 + $0x88] sm:$0xf]
    %v120 = vld [vmem:[%s3 + $0x8c] sm:$0xff]
    %v121 = vld [vmem:[%s3 + $0x94] sm:$0xff]
    %v122 = vld [vmem:[%s3 + $0x9c] sm:$0xff]
    %v123 = vld [vmem:[%s3 + $0xa4] sm:$0xf]
    %v124 = vld [vmem:[%s3 + $0xa8] sm:$0xff]
    %v125 = vld [vmem:[%s3 + $0xb0] sm:$0xff]
    %v126 = vld [vmem:[%s3 + $0xb8] sm:$0xff]
    %v127 = vld [vmem:[%s3 + $0xc0] sm:$0xf]
    %v128 = vld [vmem:[%s3 + $0xc4] sm:$0xff]
    %v129 = vld [vmem:[%s3 + $0xcc] sm:$0xff]
    %v130 = vld [vmem:[%s3 + $0xd4] sm:$0xff]
    %v131 = vld [vmem:[%s3 + $0xdc] sm:$0xf]
    %v132 = vld [vmem:[%s3 + $0xe0] sm:$0xff]
    %v133 = vld [vmem:[%s3 + $0xe8] sm:$0xff]
    %v134 = vld [vmem:[%s3 + $0xf0] sm:$0xff]
    %v135 = vld [vmem:[%s3 + $0xf8] sm:$0xf]
    %v136 = vld [vmem:[%s3 + $0xfc] sm:$0xff]
    %v137 = vld [vmem:[%s3 + $0x104] sm:$0xff]
    %v138 = vld [vmem:[%s3 + $0x10c] sm:$0xff]
    %v139 = vld [vmem:[%s3 + $0x114] sm:$0xf]
    %v140 = vld [vmem:[%s3 + $0x118] sm:$0xff]
    %v141 = vld [vmem:[%s3 + $0x120] sm:$0xff]
    %v142 = vld [vmem:[%s3 + $0x128] sm:$0xff]
    %v143 = vld [vmem:[%s3 + $0x130] sm:$0xf]
    %v144 = vld [vmem:[%s3 + $0x134] sm:$0xff]
    %v145 = vld [vmem:[%s3 + $0x13c] sm:$0xff]
    %v146 = vld [vmem:[%s3 + $0x144] sm:$0xff]
    %v147 = vld [vmem:[%s3 + $0x14c] sm:$0xf]
    %v148 = vld [vmem:[%s3 + $0x150] sm:$0xff]
    %v149 = vld [vmem:[%s3 + $0x158] sm:$0xff]
    %v150 = vld [vmem:[%s3 + $0x160] sm:$0xff]
    %v151 = vld [vmem:[%s3 + $0x168] sm:$0xf]
    %v152 = vld [vmem:[%s3 + $0x16c] sm:$0xff]
    %v153 = vld [vmem:[%s3 + $0x174] sm:$0xff]
    %v154 = vld [vmem:[%s3 + $0x17c] sm:$0xff]
    %v155 = vld [vmem:[%s3 + $0x184] sm:$0xf]
    %v156 = vld [vmem:[%s3 + $0x188] sm:$0xff]
    %v157 = vld [vmem:[%s3 + $0x190] sm:$0xff]
    %v158 = vld [vmem:[%s3 + $0x198] sm:$0xff]
    %v159 = vld [vmem:[%s3 + $0x1a0] sm:$0xf]
    %v160 = vld [vmem:[%s3 + $0x1a4] sm:$0xff]
    %v161 = vld [vmem:[%s3 + $0x1ac] sm:$0xff]
    %v162 = vld [vmem:[%s3 + $0x1b4] sm:$0xff]
    %v163 = vld [vmem:[%s3 + $0x1bc] sm:$0xf]
    %v164 = vld [vmem:[%s4] sm:$0x7f]
    %v166 = vlaneseq
    %v167 = vshrl.u32 %v166, 7
    %v168 = vsub.s32 0, %v167
    %v169 = vrot.slane %v164, %v168
    %v170 = vlaneseq
    %v171 = vshrl.u32 %v170, 7
    %v172 = vsub.s32 1, %v171
    %v173 = vrot.slane %v164, %v172
    %v174 = vlaneseq
    %v175 = vshrl.u32 %v174, 7
    %v176 = vsub.s32 2, %v175
    %v177 = vrot.slane %v164, %v176
    %v178 = vlaneseq
    %v179 = vshrl.u32 %v178, 7
    %v180 = vsub.s32 3, %v179
    %v181 = vrot.slane %v164, %v180
    %v182 = vlaneseq
    %v183 = vshrl.u32 %v182, 7
    %v184 = vsub.s32 4, %v183
    %v185 = vrot.slane %v164, %v184
    %v186 = vlaneseq
    %v187 = vshrl.u32 %v186, 7
    %v188 = vsub.s32 5, %v187
    %v189 = vrot.slane %v164, %v188
    %v190 = vlaneseq
    %v191 = vshrl.u32 %v190, 7
    %v192 = vsub.s32 6, %v191
    %v193 = vrot.slane %v164, %v192
    %v265 = vunpack.c.l.b16 %v100
    %v266 = vunpack.c.h.b16 %v100
    %v267 = vunpack.c.l.b16 %v101
    %v268 = vunpack.c.h.b16 %v101
    %v269 = vunpack.c.l.b16 %v102
    %v270 = vunpack.c.h.b16 %v102
    %v271 = vunpack.c.l.b16 %v103
    %v272 = vunpack.c.l.b16 %v104
    %v273 = vunpack.c.h.b16 %v104
    %v274 = vunpack.c.l.b16 %v105
    %v275 = vunpack.c.h.b16 %v105
    %v276 = vunpack.c.l.b16 %v106
    %v277 = vunpack.c.h.b16 %v106
    %v278 = vunpack.c.l.b16 %v107
    %v279 = vunpack.c.l.b16 %v108
    %v280 = vunpack.c.h.b16 %v108
    %v281 = vunpack.c.l.b16 %v109
    %v282 = vunpack.c.h.b16 %v109
    %v283 = vunpack.c.l.b16 %v110
    %v284 = vunpack.c.h.b16 %v110
    %v285 = vunpack.c.l.b16 %v111
    %v286 = vunpack.c.l.b16 %v112
    %v287 = vunpack.c.h.b16 %v112
    %v288 = vunpack.c.l.b16 %v113
    %v289 = vunpack.c.h.b16 %v113
    %v290 = vunpack.c.l.b16 %v114
    %v291 = vunpack.c.h.b16 %v114
    %v292 = vunpack.c.l.b16 %v115
    %v293 = vunpack.c.l.b16 %v116
    %v294 = vunpack.c.h.b16 %v116
    %v295 = vunpack.c.l.b16 %v117
    %v296 = vunpack.c.h.b16 %v117
    %v297 = vunpack.c.l.b16 %v118
    %v298 = vunpack.c.h.b16 %v118
    %v299 = vunpack.c.l.b16 %v119
    %v300 = vunpack.c.l.b16 %v120
    %v301 = vunpack.c.h.b16 %v120
    %v302 = vunpack.c.l.b16 %v121
    %v303 = vunpack.c.h.b16 %v121
    %v304 = vunpack.c.l.b16 %v122
    %v305 = vunpack.c.h.b16 %v122
    %v306 = vunpack.c.l.b16 %v123
    %v307 = vunpack.c.l.b16 %v124
    %v308 = vunpack.c.h.b16 %v124
    %v309 = vunpack.c.l.b16 %v125
    %v310 = vunpack.c.h.b16 %v125
    %v311 = vunpack.c.l.b16 %v126
    %v312 = vunpack.c.h.b16 %v126
    %v313 = vunpack.c.l.b16 %v127
    %v314 = vunpack.c.l.b16 %v128
    %v315 = vunpack.c.h.b16 %v128
    %v316 = vunpack.c.l.b16 %v129
    %v317 = vunpack.c.h.b16 %v129
    %v318 = vunpack.c.l.b16 %v130
    %v319 = vunpack.c.h.b16 %v130
    %v320 = vunpack.c.l.b16 %v131
    %v321 = vunpack.c.l.b16 %v132
    %v322 = vunpack.c.h.b16 %v132
    %v323 = vunpack.c.l.b16 %v133
    %v324 = vunpack.c.h.b16 %v133
    %v325 = vunpack.c.l.b16 %v134
    %v326 = vunpack.c.h.b16 %v134
    %v327 = vunpack.c.l.b16 %v135
    %v328 = vunpack.c.l.b16 %v136
    %v329 = vunpack.c.h.b16 %v136
    %v330 = vunpack.c.l.b16 %v137
    %v331 = vunpack.c.h.b16 %v137
    %v332 = vunpack.c.l.b16 %v138
    %v333 = vunpack.c.h.b16 %v138
    %v334 = vunpack.c.l.b16 %v139
    %v335 = vunpack.c.l.b16 %v140
    %v336 = vunpack.c.h.b16 %v140
    %v337 = vunpack.c.l.b16 %v141
    %v338 = vunpack.c.h.b16 %v141
    %v339 = vunpack.c.l.b16 %v142
    %v340 = vunpack.c.h.b16 %v142
    %v341 = vunpack.c.l.b16 %v143
    %v342 = vunpack.c.l.b16 %v144
    %v343 = vunpack.c.h.b16 %v144
    %v344 = vunpack.c.l.b16 %v145
    %v345 = vunpack.c.h.b16 %v145
    %v346 = vunpack.c.l.b16 %v146
    %v347 = vunpack.c.h.b16 %v146
    %v348 = vunpack.c.l.b16 %v147
    %v349 = vunpack.c.l.b16 %v148
    %v350 = vunpack.c.h.b16 %v148
    %v351 = vunpack.c.l.b16 %v149
    %v352 = vunpack.c.h.b16 %v149
    %v353 = vunpack.c.l.b16 %v150
    %v354 = vunpack.c.h.b16 %v150
    %v355 = vunpack.c.l.b16 %v151
    %v356 = vunpack.c.l.b16 %v152
    %v357 = vunpack.c.h.b16 %v152
    %v358 = vunpack.c.l.b16 %v153
    %v359 = vunpack.c.h.b16 %v153
    %v360 = vunpack.c.l.b16 %v154
    %v361 = vunpack.c.h.b16 %v154
    %v362 = vunpack.c.l.b16 %v155
    %v363 = vunpack.c.l.b16 %v156
    %v364 = vunpack.c.h.b16 %v156
    %v365 = vunpack.c.l.b16 %v157
    %v366 = vunpack.c.h.b16 %v157
    %v367 = vunpack.c.l.b16 %v158
    %v368 = vunpack.c.h.b16 %v158
    %v369 = vunpack.c.l.b16 %v159
    %v370 = vunpack.c.l.b16 %v160
    %v371 = vunpack.c.h.b16 %v160
    %v372 = vunpack.c.l.b16 %v161
    %v373 = vunpack.c.h.b16 %v161
    %v374 = vunpack.c.l.b16 %v162
    %v375 = vunpack.c.h.b16 %v162
    %v376 = vunpack.c.l.b16 %v163
    %v377 = vpack.c.b16 %v272, %v265
    %v378 = vpack.c.b16 %v273, %v266
    %v379 = vpack.c.b16 %v274, %v267
    %v380 = vpack.c.b16 %v275, %v268
    %v381 = vpack.c.b16 %v276, %v269
    %v382 = vpack.c.b16 %v277, %v270
    %v383 = vpack.c.b16 %v278, %v271
    %v384 = vpack.c.b16 %v286, %v279
    %v385 = vpack.c.b16 %v287, %v280
    %v386 = vpack.c.b16 %v288, %v281
    %v387 = vpack.c.b16 %v289, %v282
    %v388 = vpack.c.b16 %v290, %v283
    %v389 = vpack.c.b16 %v291, %v284
    %v390 = vpack.c.b16 %v292, %v285
    %v391 = vpack.c.b16 %v300, %v293
    %v392 = vpack.c.b16 %v301, %v294
    %v393 = vpack.c.b16 %v302, %v295
    %v394 = vpack.c.b16 %v303, %v296
    %v395 = vpack.c.b16 %v304, %v297
    %v396 = vpack.c.b16 %v305, %v298
    %v397 = vpack.c.b16 %v306, %v299
    %v398 = vpack.c.b16 %v314, %v307
    %v399 = vpack.c.b16 %v315, %v308
    %v400 = vpack.c.b16 %v316, %v309
    %v401 = vpack.c.b16 %v317, %v310
    %v402 = vpack.c.b16 %v318, %v311
    %v403 = vpack.c.b16 %v319, %v312
    %v404 = vpack.c.b16 %v320, %v313
    %v405 = vpack.c.b16 %v328, %v321
    %v406 = vpack.c.b16 %v329, %v322
    %v407 = vpack.c.b16 %v330, %v323
    %v408 = vpack.c.b16 %v331, %v324
    %v409 = vpack.c.b16 %v332, %v325
    %v410 = vpack.c.b16 %v333, %v326
    %v411 = vpack.c.b16 %v334, %v327
    %v412 = vpack.c.b16 %v342, %v335
    %v413 = vpack.c.b16 %v343, %v336
    %v414 = vpack.c.b16 %v344, %v337
    %v415 = vpack.c.b16 %v345, %v338
    %v416 = vpack.c.b16 %v346, %v339
    %v417 = vpack.c.b16 %v347, %v340
    %v418 = vpack.c.b16 %v348, %v341
    %v419 = vpack.c.b16 %v356, %v349
    %v420 = vpack.c.b16 %v357, %v350
    %v421 = vpack.c.b16 %v358, %v351
    %v422 = vpack.c.b16 %v359, %v352
    %v423 = vpack.c.b16 %v360, %v353
    %v424 = vpack.c.b16 %v361, %v354
    %v425 = vpack.c.b16 %v362, %v355
    %v426 = vpack.c.b16 %v370, %v363
    %v427 = vpack.c.b16 %v371, %v364
    %v428 = vpack.c.b16 %v372, %v365
    %v429 = vpack.c.b16 %v373, %v366
    %v430 = vpack.c.b16 %v374, %v367
    %v431 = vpack.c.b16 %v375, %v368
    %v432 = vpack.c.b16 %v376, %v369
    %489 = vmatprep.subr.bf16.mxu0 %v427
    %490 = vmatpush1.bf16.msra.mxu0 %v426
    %491 = vmatprep.subr.bf16.mxu0 %v420
    %492 = vmatpush1.bf16.msra.mxu0 %v419
    %493 = vmatprep.subr.bf16.mxu0 %v413
    %494 = vmatpush1.bf16.msra.mxu0 %v412
    %495 = vmatprep.subr.bf16.mxu0 %v406
    %496 = vmatpush1.bf16.msra.mxu0 %v405
    %497 = vmatprep.subr.bf16.mxu0 %v399
    %498 = vmatpush1.bf16.msra.mxu0 %v398
    %499 = vmatprep.subr.bf16.mxu0 %v392
    %500 = vmatpush1.bf16.msra.mxu0 %v391
    %501 = vmatprep.subr.bf16.mxu0 %v385
    %502 = vmatpush1.bf16.msra.mxu0 %v384
    %503 = vmatprep.subr.bf16.mxu0 %v378
    %504 = vmatpush1.bf16.msra.mxu0 %v377
    %505 = vmatprep.subr.bf16.mxu0 0
    %506 = vmatpush2.bf16.msra.mxu0 0
    %507 = vmatprep.subr.bf16.mxu0 0
    %508 = vmatpush2.bf16.msra.mxu0 0
    %509 = vmatprep.subr.bf16.mxu0 0
    %510 = vmatpush2.bf16.msra.mxu0 0
    %511 = vmatprep.subr.bf16.mxu0 0
    %512 = vmatpush2.bf16.msra.mxu0 0
    %513 = vmatprep.subr.bf16.mxu0 0
    %514 = vmatpush2.bf16.msra.mxu0 0
    %515 = vmatprep.subr.bf16.mxu0 0
    %516 = vmatpush2.bf16.msra.mxu0 0
    %517 = vmatprep.subr.bf16.mxu0 0
    %518 = vmatpush2.bf16.msra.mxu0 0
    %519 = vmatprep.subr.bf16.mxu0 0
    %520 = vmatpush2.bf16.msra.mxu0 0
    %521 = vmatprep.mubr.bf16.mxu0 0
    %522 = vmatmul.mubr.bf16.gmra.mxu0 %v99
    %v523 = vpop.f32.mrf.mxu0
    %v524 = vadd.f32 %v169, %v523
    %v525 = vpop.f32.mrf.mxu0
    %v526 = vadd.f32 %v173, %v525
    %v527 = vpop.f32.mrf.mxu0
    %v528 = vadd.f32 %v169, %v527
    %v529 = vpop.f32.mrf.mxu0
    %v530 = vadd.f32 %v173, %v529
    %531 = vdwg.mxu0
    %532 = vmatprep.subr.bf16.mxu0 %v429
    %533 = vmatpush1.bf16.msra.mxu0 %v428
    %534 = vmatprep.subr.bf16.mxu0 %v422
    %535 = vmatpush1.bf16.msra.mxu0 %v421
    %536 = vmatprep.subr.bf16.mxu0 %v415
    %537 = vmatpush1.bf16.msra.mxu0 %v414
    %538 = vmatprep.subr.bf16.mxu0 %v408
    %539 = vmatpush1.bf16.msra.mxu0 %v407
    %540 = vmatprep.subr.bf16.mxu0 %v401
    %541 = vmatpush1.bf16.msra.mxu0 %v400
    %542 = vmatprep.subr.bf16.mxu0 %v394
    %543 = vmatpush1.bf16.msra.mxu0 %v393
    %544 = vmatprep.subr.bf16.mxu0 %v387
    %545 = vmatpush1.bf16.msra.mxu0 %v386
    %546 = vmatprep.subr.bf16.mxu0 %v380
    %547 = vmatpush1.bf16.msra.mxu0 %v379
    %548 = vmatprep.subr.bf16.mxu0 0
    %549 = vmatpush2.bf16.msra.mxu0 0
    %550 = vmatprep.subr.bf16.mxu0 0
    %551 = vmatpush2.bf16.msra.mxu0 0
    %552 = vmatprep.subr.bf16.mxu0 0
    %553 = vmatpush2.bf16.msra.mxu0 0
    %554 = vmatprep.subr.bf16.mxu0 0
    %555 = vmatpush2.bf16.msra.mxu0 0
    %556 = vmatprep.subr.bf16.mxu0 0
    %557 = vmatpush2.bf16.msra.mxu0 0
    %558 = vmatprep.subr.bf16.mxu0 0
    %559 = vmatpush2.bf16.msra.mxu0 0
    %560 = vmatprep.subr.bf16.mxu0 0
    %561 = vmatpush2.bf16.msra.mxu0 0
    %562 = vmatprep.subr.bf16.mxu0 0
    %563 = vmatpush2.bf16.msra.mxu0 0
    %564 = vmatprep.mubr.bf16.mxu0 0
    %565 = vmatmul.mubr.bf16.gmra.mxu0 %v99
    %v566 = vpop.f32.mrf.mxu0
    %v567 = vadd.f32 %v177, %v566
    %v568 = vpop.f32.mrf.mxu0
    %v569 = vadd.f32 %v181, %v568
    %v570 = vpop.f32.mrf.mxu0
    %v571 = vadd.f32 %v177, %v570
    %v572 = vpop.f32.mrf.mxu0
    %v573 = vadd.f32 %v181, %v572
    %574 = vdwg.mxu0
    %575 = vmatprep.subr.bf16.mxu0 %v431
    %576 = vmatpush1.bf16.msra.mxu0 %v430
    %577 = vmatprep.subr.bf16.mxu0 %v424
    %578 = vmatpush1.bf16.msra.mxu0 %v423
    %579 = vmatprep.subr.bf16.mxu0 %v417
    %580 = vmatpush1.bf16.msra.mxu0 %v416
    %581 = vmatprep.subr.bf16.mxu0 %v410
    %582 = vmatpush1.bf16.msra.mxu0 %v409
    %583 = vmatprep.subr.bf16.mxu0 %v403
    %584 = vmatpush1.bf16.msra.mxu0 %v402
    %585 = vmatprep.subr.bf16.mxu0 %v396
    %586 = vmatpush1.bf16.msra.mxu0 %v395
    %587 = vmatprep.subr.bf16.mxu0 %v389
    %588 = vmatpush1.bf16.msra.mxu0 %v388
    %589 = vmatprep.subr.bf16.mxu0 %v382
    %590 = vmatpush1.bf16.msra.mxu0 %v381
    %591 = vmatprep.subr.bf16.mxu0 0
    %592 = vmatpush2.bf16.msra.mxu0 0
    %593 = vmatprep.subr.bf16.mxu0 0
    %594 = vmatpush2.bf16.msra.mxu0 0
    %595 = vmatprep.subr.bf16.mxu0 0
    %596 = vmatpush2.bf16.msra.mxu0 0
    %597 = vmatprep.subr.bf16.mxu0 0
    %598 = vmatpush2.bf16.msra.mxu0 0
    %599 = vmatprep.subr.bf16.mxu0 0
    %600 = vmatpush2.bf16.msra.mxu0 0
    %601 = vmatprep.subr.bf16.mxu0 0
    %602 = vmatpush2.bf16.msra.mxu0 0
    %603 = vmatprep.subr.bf16.mxu0 0
    %604 = vmatpush2.bf16.msra.mxu0 0
    %605 = vmatprep.subr.bf16.mxu0 0
    %606 = vmatpush2.bf16.msra.mxu0 0
    %607 = vmatprep.mubr.bf16.mxu0 0
    %608 = vmatmul.mubr.bf16.gmra.mxu0 %v99
    %v609 = vpop.f32.mrf.mxu0
    %v610 = vadd.f32 %v185, %v609
    %v611 = vpop.f32.mrf.mxu0
    %v612 = vadd.f32 %v189, %v611
    %v613 = vpop.f32.mrf.mxu0
    %v614 = vadd.f32 %v185, %v613
    %v615 = vpop.f32.mrf.mxu0
    %v616 = vadd.f32 %v189, %v615
    %617 = vdwg.mxu0
    %618 = vmatprep.subr.bf16.mxu0 0
    %619 = vmatpush1.bf16.msra.mxu0 %v432
    %620 = vmatprep.subr.bf16.mxu0 0
    %621 = vmatpush1.bf16.msra.mxu0 %v425
    %622 = vmatprep.subr.bf16.mxu0 0
    %623 = vmatpush1.bf16.msra.mxu0 %v418
    %624 = vmatprep.subr.bf16.mxu0 0
    %625 = vmatpush1.bf16.msra.mxu0 %v411
    %626 = vmatprep.subr.bf16.mxu0 0
    %627 = vmatpush1.bf16.msra.mxu0 %v404
    %628 = vmatprep.subr.bf16.mxu0 0
    %629 = vmatpush1.bf16.msra.mxu0 %v397
    %630 = vmatprep.subr.bf16.mxu0 0
    %631 = vmatpush1.bf16.msra.mxu0 %v390
    %632 = vmatprep.subr.bf16.mxu0 0
    %633 = vmatpush1.bf16.msra.mxu0 %v383
    %634 = vmatprep.subr.bf16.mxu0 0
    %635 = vmatpush2.bf16.msra.mxu0 0
    %636 = vmatprep.subr.bf16.mxu0 0
    %637 = vmatpush2.bf16.msra.mxu0 0
    %638 = vmatprep.subr.bf16.mxu0 0
    %639 = vmatpush2.bf16.msra.mxu0 0
    %640 = vmatprep.subr.bf16.mxu0 0
    %641 = vmatpush2.bf16.msra.mxu0 0
    %642 = vmatprep.subr.bf16.mxu0 0
    %643 = vmatpush2.bf16.msra.mxu0 0
    %644 = vmatprep.subr.bf16.mxu0 0
    %645 = vmatpush2.bf16.msra.mxu0 0
    %646 = vmatprep.subr.bf16.mxu0 0
    %647 = vmatpush2.bf16.msra.mxu0 0
    %648 = vmatprep.subr.bf16.mxu0 0
    %649 = vmatpush2.bf16.msra.mxu0 0
    %650 = vmatprep.mubr.bf16.mxu0 0
    %651 = vmatmul.mubr.bf16.gmra.mxu0 %v99
    %v652 = vpop.f32.mrf.mxu0
    %v653 = vadd.f32 %v193, %v652
    %v654 = vpop.f32.mrf.mxu0
    %v655 = vpop.f32.mrf.mxu0
    %v656 = vadd.f32 %v193, %v655
    %v657 = vpop.f32.mrf.mxu0
    %658 = vdwg.mxu0
    %v659 = vsub.f32 0.0, %v524
    %v660 = vsub.f32 0.0, %v526
    %v661 = vsub.f32 0.0, %v567
    %v662 = vsub.f32 0.0, %v569
    %v663 = vsub.f32 0.0, %v610
    %v664 = vsub.f32 0.0, %v612
    %v665 = vsub.f32 0.0, %v653
    %v666 = vsub.f32 0.0, %v528
    %v667 = vsub.f32 0.0, %v530
    %v668 = vsub.f32 0.0, %v571
    %v669 = vsub.f32 0.0, %v573
    %v670 = vsub.f32 0.0, %v614
    %v671 = vsub.f32 0.0, %v616
    %v672 = vsub.f32 0.0, %v656
    %v673 = vpack.c.bf16 %v666, %v659
    %v674 = vpack.c.bf16 %v667, %v660
    %v675 = vpack.c.bf16 %v668, %v661
    %v676 = vpack.c.bf16 %v669, %v662
    %v677 = vpack.c.bf16 %v670, %v663
    %v678 = vpack.c.bf16 %v671, %v664
    %v679 = vpack.c.bf16 %v672, %v665
    %v681 = vmul.bf16 %v673, 1069105081
    %v682 = vpow.bf16.pop %v681
    %v684 = vmul.bf16 %v674, 1069105081
    %v685 = vpow.bf16.pop %v684
    %v687 = vmul.bf16 %v675, 1069105081
    %v688 = vpow.bf16.pop %v687
    %v690 = vmul.bf16 %v676, 1069105081
    %v691 = vpow.bf16.pop %v690
    %v693 = vmul.bf16 %v677, 1069105081
    %v694 = vpow.bf16.pop %v693
    %v696 = vmul.bf16 %v678, 1069105081
    %v697 = vpow.bf16.pop %v696
    %v699 = vmul.bf16 %v679, 1069105081
    %v700 = vpow.bf16.pop %v699
    %v701 = vunpack.c.l.bf16 %v682
    %v702 = vunpack.c.l.bf16 %v685
    %v703 = vunpack.c.l.bf16 %v688
    %v704 = vunpack.c.l.bf16 %v691
    %v705 = vunpack.c.l.bf16 %v694
    %v706 = vunpack.c.l.bf16 %v697
    %v707 = vunpack.c.l.bf16 %v700
    %v708 = vunpack.c.h.bf16 %v682
    %v709 = vunpack.c.h.bf16 %v685
    %v710 = vunpack.c.h.bf16 %v688
    %v711 = vunpack.c.h.bf16 %v691
    %v712 = vunpack.c.h.bf16 %v694
    %v713 = vunpack.c.h.bf16 %v697
    %v714 = vunpack.c.h.bf16 %v700
    %v715 = vadd.f32 %v701, 1.0
    %v716 = vadd.f32 %v702, 1.0
    %v717 = vadd.f32 %v703, 1.0
    %v718 = vadd.f32 %v704, 1.0
    %v719 = vadd.f32 %v705, 1.0
    %v720 = vadd.f32 %v706, 1.0
    %v721 = vadd.f32 %v707, 1.0
    %v722 = vadd.f32 %v708, 1.0
    %v723 = vadd.f32 %v709, 1.0
    %v724 = vadd.f32 %v710, 1.0
    %v725 = vadd.f32 %v711, 1.0
    %v726 = vadd.f32 %v712, 1.0
    %v727 = vadd.f32 %v713, 1.0
    %v728 = vadd.f32 %v714, 1.0
    %v729 = vrcp.pop %v715
    %v730 = vrcp.pop %v716
    %v731 = vrcp.pop %v717
    %v732 = vrcp.pop %v718
    %v733 = vrcp.pop %v719
    %v734 = vrcp.pop %v720
    %v735 = vrcp.pop %v721
    %v736 = vrcp.pop %v722
    %v737 = vrcp.pop %v723
    %v738 = vrcp.pop %v724
    %v739 = vrcp.pop %v725
    %v740 = vrcp.pop %v726
    %v741 = vrcp.pop %v727
    %v742 = vrcp.pop %v728
    %743 = vst [vmem:[#allocation2] sm:$0xff] %v729
    %744 = vst [vmem:[#allocation2 + $0x8] sm:$0xff] %v730
    %745 = vst [vmem:[#allocation2 + $0x10] sm:$0xff] %v731
    %746 = vst [vmem:[#allocation2 + $0x18] sm:$0xff] %v732
    %747 = vst [vmem:[#allocation2 + $0x20] sm:$0xff] %v733
    %748 = vst [vmem:[#allocation2 + $0x28] sm:$0xff] %v734
    %vm749 = vcmask 130048
    %750 = vst.msk [vmem:[#allocation2 + $0x30] sm:$0xff] %vm749, %v735
    %751 = vst [vmem:[#allocation2 + $0x38] sm:$0xff] %v736
    %752 = vst [vmem:[#allocation2 + $0x40] sm:$0xff] %v737
    %753 = vst [vmem:[#allocation2 + $0x48] sm:$0xff] %v738
    %754 = vst [vmem:[#allocation2 + $0x50] sm:$0xff] %v739
    %755 = vst [vmem:[#allocation2 + $0x58] sm:$0xff] %v740
    %756 = vst [vmem:[#allocation2 + $0x60] sm:$0xff] %v741
    %757 = vst.msk [vmem:[#allocation2 + $0x68] sm:$0xff] %vm749, %v742
    // Predicated region
    $region22: #{tpu_custom_call.1} parent=1 // pred_check
      _
    $region23: #{tpu_custom_call.1} parent=1 // pred_check_branch
      %759 = sbr.rel (0) target = $region25
    $region24: #{tpu_custom_call.1} parent=1 // pred_region
      %s761 = ssub.s32 1792, 1792
      %762 = vsyncadd [#allocation3], %s761
      %s763 = sshll.u32 [#allocation2], 4
      %s764 = int_to_ptr.vmem [resolvable:$true] %s763
      %769 = dma.vmem_to_hbm [thread:$0]  %s764, 1792, %s5, [#allocation3], 896, 896, 56
    $region25: #{tpu_custom_call.1} parent=1 // pred_fallthru
      _
    // Predicated region
    $region26: #{tpu_custom_call.1} parent=1 // pred_check
      _
    $region27: #{tpu_custom_call.1} parent=1 // pred_check_branch
      %771 = sbr.rel (0) target = $region29
    $region28: #{tpu_custom_call.1} parent=1 // pred_region
      %772 = dma.done [#allocation3], 1792
    $region29: #{tpu_custom_call.1} parent=1 // pred_fallthru
      _
    %773 = vsyncpa [#allocation3], 1

</llo_original>
